<compile_context>
chip_gen: v7x
topology: tpu7x:2x2x1
jax: 0.10.0
libtpu: 0.0.40
codegen_flags: <defaults>
</compile_context>

<pallas_src>
import functools

import jax
import jax.numpy as jnp
from jax.experimental import pallas as pl
from jax.experimental.pallas import tpu as pltpu


LANE = 128          # TPU lane width (last dim)
ROW_ALIGN = 16      # bf16 sublane packing: batch tiles are a multiple of 16


def _round_up(n, m):
    return ((n + m - 1) // m) * m


def _cdiv(a, b):
    return -(-a // b)


def mlp_kernel(x_ref, w1_ref, b1_ref, w2_ref, b2_ref, w3_ref, b3_ref, o_ref):
    # x arrives as f32 straight from HBM; cast to bf16 in-kernel (VPU work is
    # hidden behind the MXU) instead of paying a separate XLA cast pass.
    x = x_ref[...].astype(jnp.bfloat16)
    # Layer 1: Linear (bf16 MXU operands, f32 accumulate) + bias + ReLU in f32.
    h = jnp.dot(x, w1_ref[...], preferred_element_type=jnp.float32)
    h = jnp.maximum(h + b1_ref[...], 0.0)
    # Layer 2: Linear + ReLU.
    h = jnp.dot(h.astype(jnp.bfloat16), w2_ref[...],
                preferred_element_type=jnp.float32)
    h = jnp.maximum(h + b2_ref[...], 0.0)
    # Layer 3: Linear (no activation). w3 holds only the real out_size columns
    # so the store writes exactly out_size f32 per row (no 128-lane padding in
    # the HBM output stream).
    out = jnp.dot(h.astype(jnp.bfloat16), w3_ref[...],
                  preferred_element_type=jnp.float32)
    o_ref[...] = (out + b3_ref[...]).astype(o_ref.dtype)


def prepare_params(params):
    """One-time padding + bf16 cast of the weights (hoisted off the hot path).

    Hidden dim is zero-padded to 128 lanes (padded lanes stay exactly 0 through
    every layer); the output feature dim is left at its real size so the kernel
    emits a compact (batch, out_size) result.
    """
    w1, b1 = params["w1"], params["b1"]
    w2, b2 = params["w2"], params["b2"]
    w3, b3 = params["w3"], params["b3"]
    in_size, hidden = w1.shape
    out_size = w3.shape[1]
    hidden_p = _round_up(hidden, LANE)

    def pad2(a, rows, cols):
        return jnp.pad(a, ((0, rows - a.shape[0]), (0, cols - a.shape[1])))

    return {
        "w1": pad2(w1, in_size, hidden_p).astype(jnp.bfloat16),
        "b1": pad2(b1, 1, hidden_p).astype(jnp.float32),
        "w2": pad2(w2, hidden_p, hidden_p).astype(jnp.bfloat16),
        "b2": pad2(b2, 1, hidden_p).astype(jnp.float32),
        "w3": pad2(w3, hidden_p, out_size).astype(jnp.bfloat16),
        "b3": b3.astype(jnp.float32),
    }


@functools.partial(jax.jit, static_argnames=("tile_m_max",))
def particle_net_forward(x, prepared, tile_m_max=4096):
    """x: (batch, input_size) float32; prepared: output of prepare_params()."""
    w1p, b1p = prepared["w1"], prepared["b1"]
    w2p, b2p = prepared["w2"], prepared["b2"]
    w3p, b3p = prepared["w3"], prepared["b3"]

    batch, in_size = x.shape
    hidden_p = w1p.shape[1]
    out_size = w3p.shape[1]

    # Tile sizing: multiple of 16, capped (v7x 64 MiB VMEM budget), and at
    # least 2 grid steps so "parallel" can shard across v7x's 2 TensorCores.
    tile_m_max = max(ROW_ALIGN, (tile_m_max // ROW_ALIGN) * ROW_ALIGN)
    num_tiles = max(2, _cdiv(batch, tile_m_max))
    tile_m = _round_up(_cdiv(batch, num_tiles), ROW_ALIGN)
    batch_p = tile_m * num_tiles

    xp = x if batch_p == batch else jnp.pad(x, ((0, batch_p - batch), (0, 0)))
    grid = (num_tiles,)

    # Weights/biases: full-extent blocks, constant index_map -> VMEM-resident
    # across every grid step (one DMA each).
    def const_spec(a):
        return pl.BlockSpec(a.shape, lambda i, _nd=a.ndim: (0,) * _nd)

    flops = 2 * batch_p * (in_size * hidden_p
                           + hidden_p * hidden_p
                           + hidden_p * out_size)
    bytes_accessed = (
        xp.size * 4                                       # x read (f32)
        + (w1p.size + w2p.size + w3p.size) * 2            # bf16 weights
        + (b1p.size + b2p.size + b3p.size) * 4            # f32 biases
        + batch_p * out_size * 4                          # compact f32 output
    )

    out = pl.pallas_call(
        mlp_kernel,
        out_shape=jax.ShapeDtypeStruct((batch_p, out_size), jnp.float32),
        grid_spec=pltpu.PrefetchScalarGridSpec(
            num_scalar_prefetch=0,
            grid=grid,
            in_specs=[
                pl.BlockSpec((tile_m, in_size), lambda i: (i, 0)),
                const_spec(w1p), const_spec(b1p),
                const_spec(w2p), const_spec(b2p),
                const_spec(w3p), const_spec(b3p),
            ],
            out_specs=pl.BlockSpec((tile_m, out_size), lambda i: (i, 0)),
        ),
        compiler_params=pltpu.CompilerParams(
            dimension_semantics=("parallel",),       # 2x across TCs on v7x
            vmem_limit_bytes=48 * 1024 * 1024,       # safe on v5e/v6e/v7x
        ),
        cost_estimate=pl.CostEstimate(
            flops=int(flops),
            transcendentals=0,
            bytes_accessed=int(bytes_accessed),
        ),
    )(xp, w1p, b1p, w2p, b2p, w3p, b3p)

    # Only a row trim remains (no padded-column slice pass).
    return out if batch_p == batch else out[:batch]


def init_params(key, input_size, hidden_size, output_size):
    """Deterministic synthetic init (uniform like torch's default range)."""
    ks = jax.random.split(key, 6)

    def lin(kw, kb, fan_in, fan_out):
        bound = 1.0 / jnp.sqrt(jnp.float32(fan_in))
        # stored as (in, out) == torch weight (out, in) transposed
        w = jax.random.uniform(kw, (fan_in, fan_out), jnp.float32, -bound, bound)
        b = jax.random.uniform(kb, (1, fan_out), jnp.float32, -bound, bound)
        return w, b

    w1, b1 = lin(ks[0], ks[1], input_size, hidden_size)
    w2, b2 = lin(ks[2], ks[3], hidden_size, hidden_size)
    w3, b3 = lin(ks[4], ks[5], hidden_size, output_size)
    return {"w1": w1, "b1": b1, "w2": w2, "b2": b2, "w3": w3, "b3": b3}


def reference_forward(x, p):
    h = jnp.maximum(x @ p["w1"] + p["b1"], 0.0)
    h = jnp.maximum(h @ p["w2"] + p["b2"], 0.0)
    return h @ p["w3"] + p["b3"]


if __name__ == "__main__":
    input_size, hidden_size, output_size = 16, 32, 8
    batch = 250  # non-multiple of the tile to exercise row padding + trimming

    key = jax.random.PRNGKey(0)
    kx, kp = jax.random.split(key)
    x = jax.random.normal(kx, (batch, input_size), jnp.float32)
    params = init_params(kp, input_size, hidden_size, output_size)

    # One-time preprocessing (off the hot path / cacheable).
    prepared = prepare_params(params)
    prepared = jax.tree_util.tree_map(jax.block_until_ready, prepared)

    # Small tile so the test exercises a multi-step grid with resident weights.
    out = particle_net_forward(x, prepared, tile_m_max=64)
    out = jax.block_until_ready(out)

    ref = reference_forward(x, params)
    assert out.shape == (batch, output_size)
    # bf16 MXU operands with f32 accumulation -> loose-ish tolerance vs f32 ref.
    assert jnp.allclose(out, ref, atol=5e-2, rtol=5e-2), (
        float(jnp.max(jnp.abs(out - ref))))

    print("KERNEL_OK")
</pallas_src>

<mosaic_0001>
module attributes {stable_mosaic.version = 11 : i64} {
  func.func @mlp_kernel(%arg0: i32, %arg1: memref<64x16xf32, #tpu.memory_space<vmem>>, %arg2: memref<16x128xbf16, #tpu.memory_space<vmem>>, %arg3: memref<1x128xf32, #tpu.memory_space<vmem>>, %arg4: memref<128x128xbf16, #tpu.memory_space<vmem>>, %arg5: memref<1x128xf32, #tpu.memory_space<vmem>>, %arg6: memref<128x8xbf16, #tpu.memory_space<vmem>>, %arg7: memref<1x8xf32, #tpu.memory_space<vmem>>, %arg8: memref<64x8xf32, #tpu.memory_space<vmem>>) attributes {dimension_semantics = [#tpu.dimension_semantics<parallel>], iteration_bounds = array<i64: 4>, scalar_prefetch = 0 : i64, scratch_operands = 0 : i64, tpu.core_type = #tpu.core_type<tc>, window_params = [{transform_indices = @transform_0, window_bounds = array<i64: 64, 16>}, {pipeline_mode = #tpu.pipeline_mode<synchronous>, transform_indices = @transform_1, window_bounds = array<i64: 16, 128>}, {pipeline_mode = #tpu.pipeline_mode<synchronous>, transform_indices = @transform_2, window_bounds = array<i64: 1, 128>}, {pipeline_mode = #tpu.pipeline_mode<synchronous>, transform_indices = @transform_3, window_bounds = array<i64: 128, 128>}, {pipeline_mode = #tpu.pipeline_mode<synchronous>, transform_indices = @transform_4, window_bounds = array<i64: 1, 128>}, {pipeline_mode = #tpu.pipeline_mode<synchronous>, transform_indices = @transform_5, window_bounds = array<i64: 128, 8>}, {pipeline_mode = #tpu.pipeline_mode<synchronous>, transform_indices = @transform_6, window_bounds = array<i64: 1, 8>}, {transform_indices = @transform_7, window_bounds = array<i64: 64, 8>}]} {
    %c0 = arith.constant 0 : index
    %c0_0 = arith.constant 0 : index
    %0 = vector.load %arg1[%c0, %c0_0] : memref<64x16xf32, #tpu.memory_space<vmem>>, vector<64x16xf32>
    %1 = arith.truncf %0 : vector<64x16xf32> to vector<64x16xbf16>
    %c0_1 = arith.constant 0 : index
    %c0_2 = arith.constant 0 : index
    %2 = vector.load %arg2[%c0_1, %c0_2] : memref<16x128xbf16, #tpu.memory_space<vmem>>, vector<16x128xbf16>
    %cst = arith.constant dense<0.000000e+00> : vector<64x128xf32>
    %3 = tpu.matmul %1, %2, %cst {dimension_numbers = #tpu.dot_dimension_numbers<[1], [0], [0], [1], [0, 0, 1, 1], [], []>} : vector<64x16xbf16>, vector<16x128xbf16>, vector<64x128xf32> -> vector<64x128xf32>
    %c0_3 = arith.constant 0 : index
    %c0_4 = arith.constant 0 : index
    %4 = vector.load %arg3[%c0_3, %c0_4] : memref<1x128xf32, #tpu.memory_space<vmem>>, vector<1x128xf32>
    %5 = vector.broadcast %4 : vector<1x128xf32> to vector<64x128xf32>
    %6 = arith.addf %3, %5 : vector<64x128xf32>
    %cst_5 = arith.constant 0.000000e+00 : f32
    %7 = vector.broadcast %cst_5 : f32 to vector<64x128xf32>
    %8 = arith.maximumf %6, %7 : vector<64x128xf32>
    %9 = arith.truncf %8 : vector<64x128xf32> to vector<64x128xbf16>
    %c0_6 = arith.constant 0 : index
    %c0_7 = arith.constant 0 : index
    %10 = vector.load %arg4[%c0_6, %c0_7] : memref<128x128xbf16, #tpu.memory_space<vmem>>, vector<128x128xbf16>
    %cst_8 = arith.constant dense<0.000000e+00> : vector<64x128xf32>
    %11 = tpu.matmul %9, %10, %cst_8 {dimension_numbers = #tpu.dot_dimension_numbers<[1], [0], [0], [1], [0, 0, 1, 1], [], []>} : vector<64x128xbf16>, vector<128x128xbf16>, vector<64x128xf32> -> vector<64x128xf32>
    %c0_9 = arith.constant 0 : index
    %c0_10 = arith.constant 0 : index
    %12 = vector.load %arg5[%c0_9, %c0_10] : memref<1x128xf32, #tpu.memory_space<vmem>>, vector<1x128xf32>
    %13 = vector.broadcast %12 : vector<1x128xf32> to vector<64x128xf32>
    %14 = arith.addf %11, %13 : vector<64x128xf32>
    %cst_11 = arith.constant 0.000000e+00 : f32
    %15 = vector.broadcast %cst_11 : f32 to vector<64x128xf32>
    %16 = arith.maximumf %14, %15 : vector<64x128xf32>
    %17 = arith.truncf %16 : vector<64x128xf32> to vector<64x128xbf16>
    %c0_12 = arith.constant 0 : index
    %c0_13 = arith.constant 0 : index
    %18 = vector.load %arg6[%c0_12, %c0_13] : memref<128x8xbf16, #tpu.memory_space<vmem>>, vector<128x8xbf16>
    %cst_14 = arith.constant dense<0.000000e+00> : vector<64x8xf32>
    %19 = tpu.matmul %17, %18, %cst_14 {dimension_numbers = #tpu.dot_dimension_numbers<[1], [0], [0], [1], [0, 0, 1, 1], [], []>} : vector<64x128xbf16>, vector<128x8xbf16>, vector<64x8xf32> -> vector<64x8xf32>
    %c0_15 = arith.constant 0 : index
    %c0_16 = arith.constant 0 : index
    %20 = vector.load %arg7[%c0_15, %c0_16] : memref<1x8xf32, #tpu.memory_space<vmem>>, vector<1x8xf32>
    %21 = vector.broadcast %20 : vector<1x8xf32> to vector<64x8xf32>
    %22 = arith.addf %19, %21 : vector<64x8xf32>
    %c0_17 = arith.constant 0 : index
    %c0_18 = arith.constant 0 : index
    %23 = vector.load %arg8[%c0_17, %c0_18] : memref<64x8xf32, #tpu.memory_space<vmem>>, vector<64x8xf32>
    tpu.vector_store %arg8[%c0_17, %c0_18], %22 {strides = array<i32>} : memref<64x8xf32, #tpu.memory_space<vmem>>, vector<64x8xf32>,
    return
  }
  func.func @transform_0(%arg0: i32) -> (i32, i32) {
    %c0_i32 = arith.constant 0 : i32
    %c0_i32_0 = arith.constant 0 : i32
    return %arg0, %c0_i32 : i32, i32
  }
  func.func @transform_1(%arg0: i32) -> (i32, i32) {
    %c0_i32 = arith.constant 0 : i32
    %c0_i32_0 = arith.constant 0 : i32
    %c0_i32_1 = arith.constant 0 : i32
    return %c0_i32, %c0_i32_0 : i32, i32
  }
  func.func @transform_2(%arg0: i32) -> (i32, i32) {
    %c0_i32 = arith.constant 0 : i32
    %c0_i32_0 = arith.constant 0 : i32
    %c0_i32_1 = arith.constant 0 : i32
    return %c0_i32, %c0_i32_0 : i32, i32
  }
  func.func @transform_3(%arg0: i32) -> (i32, i32) {
    %c0_i32 = arith.constant 0 : i32
    %c0_i32_0 = arith.constant 0 : i32
    %c0_i32_1 = arith.constant 0 : i32
    return %c0_i32, %c0_i32_0 : i32, i32
  }
  func.func @transform_4(%arg0: i32) -> (i32, i32) {
    %c0_i32 = arith.constant 0 : i32
    %c0_i32_0 = arith.constant 0 : i32
    %c0_i32_1 = arith.constant 0 : i32
    return %c0_i32, %c0_i32_0 : i32, i32
  }
  func.func @transform_5(%arg0: i32) -> (i32, i32) {
    %c0_i32 = arith.constant 0 : i32
    %c0_i32_0 = arith.constant 0 : i32
    %c0_i32_1 = arith.constant 0 : i32
    return %c0_i32, %c0_i32_0 : i32, i32
  }
  func.func @transform_6(%arg0: i32) -> (i32, i32) {
    %c0_i32 = arith.constant 0 : i32
    %c0_i32_0 = arith.constant 0 : i32
    %c0_i32_1 = arith.constant 0 : i32
    return %c0_i32, %c0_i32_0 : i32, i32
  }
  func.func @transform_7(%arg0: i32) -> (i32, i32) {
    %c0_i32 = arith.constant 0 : i32
    %c0_i32_0 = arith.constant 0 : i32
    return %arg0, %c0_i32 : i32, i32
  }
}

</mosaic_0001>

<llo_original>
// kernel: particle_net_forward.1
$region0: #{particle_net_forward.1}
  #allocation0 [shape = 'u32[]', space=smem, size = 0x4, offset = 0x4, fixed_abs, tag = 'smem constant byte address 0x4 - core index']
  #allocation1 [shape = 'u32[144,128]{1,0:T(1,128)}', space=vmem, size = 0x12000, scoped, tag = 'internal scratch']
  %s0 = inlined_call_operand.vmem [shape: f32[256,16], index: 0, kind: input, shape index: {}]
  %s1 = inlined_call_operand.vmem [shape: bf16[16,128], index: 1, kind: input, shape index: {}]
  %s2 = inlined_call_operand.vmem [shape: f32[1,128], index: 2, kind: input, shape index: {}]
  %s3 = inlined_call_operand.vmem [shape: bf16[128,128], index: 3, kind: input, shape index: {}]
  %s4 = inlined_call_operand.vmem [shape: f32[1,128], index: 4, kind: input, shape index: {}]
  %s5 = inlined_call_operand.vmem [shape: bf16[128,8], index: 5, kind: input, shape index: {}]
  %s6 = inlined_call_operand.vmem [shape: f32[1,8], index: 6, kind: input, shape index: {}]
  %s7 = inlined_call_operand.vmem [shape: f32[256,8], index: 7, kind: output, shape index: {}]
  %s8 = sld [smem:[#allocation0]]
  $region61: #{particle_net_forward.1} parent=0
    _
  %s10 = ssub.s32 1, %s8
  %s11 = scalar_select 0, %s10, %s8
  loop: start=0, step=1, limit=6
  $region2: #{particle_net_forward.1} parent=0 // loop_pre_header
    _
  $region3: #{particle_net_forward.1} parent=0 // loop_header
    %s13 = sphi 0, %s17
    %p14 = scmp.ge.s32.totalorder %s13, 6
    %s23 = sphi 0, %s25
    %s26 = sphi 0, %s23
    %s27 = sphi 0, %s26
    %s43 = sphi 0, %s27
    %s47 = sphi 0, %s47
    %s49 = sphi 0, %s47
    %s50 = sphi 0, %s49
    %s64 = sphi 0, %s50
    %s68 = sphi 0, %s68
    %s70 = sphi 0, %s68
    %s71 = sphi 0, %s70
    %s85 = sphi 0, %s71
    %s89 = sphi 0, %s89
    %s91 = sphi 0, %s89
    %s92 = sphi 0, %s91
    %s106 = sphi 0, %s92
    %s110 = sphi 0, %s110
    %s112 = sphi 0, %s110
    %s113 = sphi 0, %s112
    %s127 = sphi 0, %s113
    %s131 = sphi 0, %s131
    %s133 = sphi 0, %s131
    %s134 = sphi 0, %s133
    %s148 = sphi 0, %s134
    %s152 = sphi 0, %s152
    %s154 = sphi 0, %s152
    %s155 = sphi 0, %s154
    %s169 = sphi 0, %s155
    %s175 = sphi 0, %s177
    %s178 = sphi 0, %s175
    %s179 = sphi 0, %s178
    %s195 = sphi 0, %s179
  $region4: #{particle_net_forward.1} parent=0 // loop_header_branch
    %16 = sbr.rel (%p14) target = $region8
  $region5: #{particle_net_forward.1} parent=0 // loop_body
    %s18 = ssub.s32 %s13, 1
    %s19 = ssub.s32 %s13, 2
    %s20 = sadd.s32 %s13, 1
    %s21 = ssub.s32 %s13, %s20
    %p22 = scmp.eq.s32.totalorder %s21, 0
    %s24 = sadd.s32 %s23, 1
    %s25 = scalar_select %p22, %s23, %s24
    %p28 = pneg %p22
    %p29 = scmp.eq.s32.totalorder %s13, 3
    %p30 = por %p28, %p29
    %p31 = scmp.ne.s32.totalorder %s23, %s26
    %p32 = scmp.eq.s32.totalorder %s13, 0
    %p33 = por %p31, %p32
    %p34 = scmp.ne.s32.totalorder %s23, %s26
    %p35 = scmp.eq.s32.totalorder %s18, 3
    %p36 = por %p34, %p35
    %p37 = scmp.ne.s32.totalorder %s26, %s27
    %p38 = scmp.eq.s32.totalorder %s18, 0
    %p39 = por %p37, %p38
    %p40 = scmp.ne.s32.totalorder %s26, %s27
    %p41 = scmp.eq.s32.totalorder %s19, 3
    %p42 = por %p40, %p41
    %p44 = scmp.ne.s32.totalorder %s27, %s43
    %p45 = scmp.eq.s32.totalorder %s19, 0
    %p46 = por %p44, %p45
    %s48 = sadd.s32 %s47, 1
    %p51 = scmp.eq.s32.totalorder %s13, 3
    %p52 = scmp.ne.s32.totalorder %s47, %s49
    %p53 = scmp.eq.s32.totalorder %s13, 0
    %p54 = por %p52, %p53
    %p55 = scmp.ne.s32.totalorder %s47, %s49
    %p56 = scmp.eq.s32.totalorder %s18, 3
    %p57 = por %p55, %p56
    %p58 = scmp.ne.s32.totalorder %s49, %s50
    %p59 = scmp.eq.s32.totalorder %s18, 0
    %p60 = por %p58, %p59
    %p61 = scmp.ne.s32.totalorder %s49, %s50
    %p62 = scmp.eq.s32.totalorder %s19, 3
    %p63 = por %p61, %p62
    %p65 = scmp.ne.s32.totalorder %s50, %s64
    %p66 = scmp.eq.s32.totalorder %s19, 0
    %p67 = por %p65, %p66
    %s69 = sadd.s32 %s68, 1
    %p72 = scmp.eq.s32.totalorder %s13, 3
    %p73 = scmp.ne.s32.totalorder %s68, %s70
    %p74 = scmp.eq.s32.totalorder %s13, 0
    %p75 = por %p73, %p74
    %p76 = scmp.ne.s32.totalorder %s68, %s70
    %p77 = scmp.eq.s32.totalorder %s18, 3
    %p78 = por %p76, %p77
    %p79 = scmp.ne.s32.totalorder %s70, %s71
    %p80 = scmp.eq.s32.totalorder %s18, 0
    %p81 = por %p79, %p80
    %p82 = scmp.ne.s32.totalorder %s70, %s71
    %p83 = scmp.eq.s32.totalorder %s19, 3
    %p84 = por %p82, %p83
    %p86 = scmp.ne.s32.totalorder %s71, %s85
    %p87 = scmp.eq.s32.totalorder %s19, 0
    %p88 = por %p86, %p87
    %s90 = sadd.s32 %s89, 1
    %p93 = scmp.eq.s32.totalorder %s13, 3
    %p94 = scmp.ne.s32.totalorder %s89, %s91
    %p95 = scmp.eq.s32.totalorder %s13, 0
    %p96 = por %p94, %p95
    %p97 = scmp.ne.s32.totalorder %s89, %s91
    %p98 = scmp.eq.s32.totalorder %s18, 3
    %p99 = por %p97, %p98
    %p100 = scmp.ne.s32.totalorder %s91, %s92
    %p101 = scmp.eq.s32.totalorder %s18, 0
    %p102 = por %p100, %p101
    %p103 = scmp.ne.s32.totalorder %s91, %s92
    %p104 = scmp.eq.s32.totalorder %s19, 3
    %p105 = por %p103, %p104
    %p107 = scmp.ne.s32.totalorder %s92, %s106
    %p108 = scmp.eq.s32.totalorder %s19, 0
    %p109 = por %p107, %p108
    %s111 = sadd.s32 %s110, 1
    %p114 = scmp.eq.s32.totalorder %s13, 3
    %p115 = scmp.ne.s32.totalorder %s110, %s112
    %p116 = scmp.eq.s32.totalorder %s13, 0
    %p117 = por %p115, %p116
    %p118 = scmp.ne.s32.totalorder %s110, %s112
    %p119 = scmp.eq.s32.totalorder %s18, 3
    %p120 = por %p118, %p119
    %p121 = scmp.ne.s32.totalorder %s112, %s113
    %p122 = scmp.eq.s32.totalorder %s18, 0
    %p123 = por %p121, %p122
    %p124 = scmp.ne.s32.totalorder %s112, %s113
    %p125 = scmp.eq.s32.totalorder %s19, 3
    %p126 = por %p124, %p125
    %p128 = scmp.ne.s32.totalorder %s113, %s127
    %p129 = scmp.eq.s32.totalorder %s19, 0
    %p130 = por %p128, %p129
    %s132 = sadd.s32 %s131, 1
    %p135 = scmp.eq.s32.totalorder %s13, 3
    %p136 = scmp.ne.s32.totalorder %s131, %s133
    %p137 = scmp.eq.s32.totalorder %s13, 0
    %p138 = por %p136, %p137
    %p139 = scmp.ne.s32.totalorder %s131, %s133
    %p140 = scmp.eq.s32.totalorder %s18, 3
    %p141 = por %p139, %p140
    %p142 = scmp.ne.s32.totalorder %s133, %s134
    %p143 = scmp.eq.s32.totalorder %s18, 0
    %p144 = por %p142, %p143
    %p145 = scmp.ne.s32.totalorder %s133, %s134
    %p146 = scmp.eq.s32.totalorder %s19, 3
    %p147 = por %p145, %p146
    %p149 = scmp.ne.s32.totalorder %s134, %s148
    %p150 = scmp.eq.s32.totalorder %s19, 0
    %p151 = por %p149, %p150
    %s153 = sadd.s32 %s152, 1
    %p156 = scmp.eq.s32.totalorder %s13, 3
    %p157 = scmp.ne.s32.totalorder %s152, %s154
    %p158 = scmp.eq.s32.totalorder %s13, 0
    %p159 = por %p157, %p158
    %p160 = scmp.ne.s32.totalorder %s152, %s154
    %p161 = scmp.eq.s32.totalorder %s18, 3
    %p162 = por %p160, %p161
    %p163 = scmp.ne.s32.totalorder %s154, %s155
    %p164 = scmp.eq.s32.totalorder %s18, 0
    %p165 = por %p163, %p164
    %p166 = scmp.ne.s32.totalorder %s154, %s155
    %p167 = scmp.eq.s32.totalorder %s19, 3
    %p168 = por %p166, %p167
    %p170 = scmp.ne.s32.totalorder %s155, %s169
    %p171 = scmp.eq.s32.totalorder %s19, 0
    %p172 = por %p170, %p171
    %s173 = ssub.s32 %s13, %s20
    %p174 = scmp.eq.s32.totalorder %s173, 0
    %s176 = sadd.s32 %s175, 1
    %s177 = scalar_select %p174, %s175, %s176
    %p180 = pneg %p174
    %p181 = scmp.eq.s32.totalorder %s13, 3
    %p182 = por %p180, %p181
    %p183 = scmp.ne.s32.totalorder %s175, %s178
    %p184 = scmp.eq.s32.totalorder %s13, 0
    %p185 = por %p183, %p184
    %p186 = scmp.ne.s32.totalorder %s175, %s178
    %p187 = scmp.eq.s32.totalorder %s18, 3
    %p188 = por %p186, %p187
    %p189 = scmp.ne.s32.totalorder %s178, %s179
    %p190 = scmp.eq.s32.totalorder %s18, 0
    %p191 = por %p189, %p190
    %p192 = scmp.ne.s32.totalorder %s178, %s179
    %p193 = scmp.eq.s32.totalorder %s19, 3
    %p194 = por %p192, %p193
    %p196 = scmp.ne.s32.totalorder %s179, %s195
    %p197 = scmp.eq.s32.totalorder %s19, 0
    %p198 = por %p196, %p197
    %p199 = scmp.le.s32.totalorder 1, %s13
    %p200 = scmp.lt.s32.totalorder %s13, 5
    %p201 = pnand %p199, %p200
    %p202 = pneg %p201
    // Predicated region
    $region9: #{particle_net_forward.1} parent=5 // pred_check
      _
    $region10: #{particle_net_forward.1} parent=5 // pred_check_branch
      %204 = sbr.rel (%p201) target = $region12
    $region11: #{particle_net_forward.1} parent=5 // pred_region
      %s205 = ssub.s32 %s13, 1
      // Predicated region
      $region13: #{particle_net_forward.1} parent=11 // pred_check
        %p206 = pneg %p60
      $region14: #{particle_net_forward.1} parent=11 // pred_check_branch
        %208 = sbr.rel (%p206) target = $region16
      $region15: #{particle_net_forward.1} parent=11 // pred_region
        _
      $region16: #{particle_net_forward.1} parent=11 // pred_fallthru
        _
      // Predicated region
      $region17: #{particle_net_forward.1} parent=11 // pred_check
        %p209 = pneg %p81
      $region18: #{particle_net_forward.1} parent=11 // pred_check_branch
        %211 = sbr.rel (%p209) target = $region20
      $region19: #{particle_net_forward.1} parent=11 // pred_region
        _
      $region20: #{particle_net_forward.1} parent=11 // pred_fallthru
        _
      // Predicated region
      $region21: #{particle_net_forward.1} parent=11 // pred_check
        %p212 = pneg %p102
      $region22: #{particle_net_forward.1} parent=11 // pred_check_branch
        %214 = sbr.rel (%p212) target = $region24
      $region23: #{particle_net_forward.1} parent=11 // pred_region
        _
      $region24: #{particle_net_forward.1} parent=11 // pred_fallthru
        _
      // Predicated region
      $region25: #{particle_net_forward.1} parent=11 // pred_check
        %p215 = pneg %p123
      $region26: #{particle_net_forward.1} parent=11 // pred_check_branch
        %217 = sbr.rel (%p215) target = $region28
      $region27: #{particle_net_forward.1} parent=11 // pred_region
        _
      $region28: #{particle_net_forward.1} parent=11 // pred_fallthru
        _
      // Predicated region
      $region29: #{particle_net_forward.1} parent=11 // pred_check
        %p218 = pneg %p144
      $region30: #{particle_net_forward.1} parent=11 // pred_check_branch
        %220 = sbr.rel (%p218) target = $region32
      $region31: #{particle_net_forward.1} parent=11 // pred_region
        _
      $region32: #{particle_net_forward.1} parent=11 // pred_fallthru
        _
      // Predicated region
      $region33: #{particle_net_forward.1} parent=11 // pred_check
        %p221 = pneg %p165
      $region34: #{particle_net_forward.1} parent=11 // pred_check_branch
        %223 = sbr.rel (%p221) target = $region36
      $region35: #{particle_net_forward.1} parent=11 // pred_region
        _
      $region36: #{particle_net_forward.1} parent=11 // pred_fallthru
        _
    $region12: #{particle_net_forward.1} parent=5 // pred_fallthru
      _
    %p224 = scmp.lt.s32.totalorder %s13, 4
    // Predicated region
    $region37: #{particle_net_forward.1} parent=5 // pred_check
      %p225 = pneg %p224
    $region38: #{particle_net_forward.1} parent=5 // pred_check_branch
      %227 = sbr.rel (%p225) target = $region40
    $region39: #{particle_net_forward.1} parent=5 // pred_region
      // Predicated region
      $region41: #{particle_net_forward.1} parent=39 // pred_check
        %p228 = pneg %p33
      $region42: #{particle_net_forward.1} parent=39 // pred_check_branch
        %230 = sbr.rel (%p228) target = $region44
      $region43: #{particle_net_forward.1} parent=39 // pred_region
        %s231 = smul.u32 8, %s13
        %p232 = scmp.lt.s32.totalorder %s231, 31
        %s233 = scalar_select %p232, %s231, 31
        %s234 = smul.addr %s233, 8
        %s235 = scalar_lea.vmem %s0, %s234
        %s236 = smul.u32 8, %s13
      $region44: #{particle_net_forward.1} parent=39 // pred_fallthru
        _
    $region40: #{particle_net_forward.1} parent=5 // pred_fallthru
      _
    %p237 = scmp.le.s32.totalorder 1, %s13
    %p238 = scmp.lt.s32.totalorder %s13, 5
    %p239 = pnand %p237, %p238
    %p240 = pneg %p239
    // Predicated region
    $region45: #{particle_net_forward.1} parent=5 // pred_check
      _
    $region46: #{particle_net_forward.1} parent=5 // pred_check_branch
      %242 = sbr.rel (%p239) target = $region48
    $region47: #{particle_net_forward.1} parent=5 // pred_region
      %s243 = ssub.s32 %s13, 1
      %s244 = smul.u32 8, %s18
      %p245 = scmp.lt.s32.totalorder %s244, 31
      %s246 = scalar_select %p245, %s244, 31
      %s247 = smul.addr %s246, 8
      %s248 = scalar_lea.vmem %s0, %s247
      %p249 = pneg %p39
      %p250 = pneg %p36
      %p251 = pneg %p60
      %p252 = pneg %p57
      %p253 = pneg %p81
      %p254 = pneg %p78
      %p255 = pneg %p102
      %p256 = pneg %p99
      %p257 = pneg %p123
      %p258 = pneg %p120
      %p259 = pneg %p144
      %p260 = pneg %p141
      %p261 = pneg %p165
      %p262 = pneg %p162
      %p263 = pneg %p191
      %p264 = pneg %p188
      %s265 = smul.u32 8, %s18
      %p266 = scmp.lt.s32.totalorder %s265, 31
      %s267 = scalar_select %p266, %s265, 31
      %s268 = smul.addr %s267, 8
      %s269 = scalar_lea.vmem %s7, %s268
      %s270 = smul.u32 8, %s18
      %p271 = scmp.lt.s32.totalorder %s270, 31
      %s272 = scalar_select %p271, %s270, 31
      %s273 = smul.addr %s272, 8
      %s274 = scalar_lea.vmem %s0, %s273
      %s275 = smul.u32 8, %s18
      %s276 = smul.u32 8, %s18
      %p277 = scmp.lt.s32.totalorder %s276, 31
      %s278 = scalar_select %p277, %s276, 31
      %s279 = smul.addr %s278, 8
      %s280 = scalar_lea.vmem %s7, %s279
      %s281 = smul.u32 8, %s18
      %v283 = vld [vmem:[%s274] sm:$0xff]
      %v284 = vld [vmem:[%s274 + $0x8] sm:$0xff]
      %v285 = vld [vmem:[%s274 + $0x10] sm:$0xff]
      %v286 = vld [vmem:[%s274 + $0x18] sm:$0xff]
      %v287 = vld [vmem:[%s274 + $0x20] sm:$0xff]
      %v288 = vld [vmem:[%s274 + $0x28] sm:$0xff]
      %v289 = vld [vmem:[%s274 + $0x30] sm:$0xff]
      %v290 = vld [vmem:[%s274 + $0x38] sm:$0xff]
      %v291 = vpack.c.bf16 %v284, %v283
      %v292 = vpack.c.bf16 %v286, %v285
      %v293 = vpack.c.bf16 %v288, %v287
      %v294 = vpack.c.bf16 %v290, %v289
      %v295 = vld [vmem:[%s1] sm:$0xf]
      %v296 = vld [vmem:[%s1 + $0x4] sm:$0xf]
      %v297 = vld [vmem:[%s2] sm:$0x1]
      %v299 = vlaneseq
      %v300 = vshrl.u32 %v299, 7
      %v301 = vsub.s32 0, %v300
      %v302 = vrot.slane %v297, %v301
      %v306 = vunpack.c.l.b16 %v295
      %v307 = vunpack.c.l.b16 %v296
      %v308 = vpack.c.b16 %v307, %v306
      %vm310 = vcmask 130048
      %v312 = vsel %vm310, %v291, 0
      %v315 = vsel %vm310, %v292, 0
      %v318 = vsel %vm310, %v293, 0
      %v321 = vsel %vm310, %v294, 0
      %323 = vmatprep.subr.bf16.mxu0 0
      %324 = vmatpush1.bf16.msra.mxu0 %v308
      %325 = vmatprep.subr.bf16.mxu0 0
      %326 = vmatpush1.bf16.msra.mxu0 0
      %327 = vmatprep.subr.bf16.mxu0 0
      %328 = vmatpush1.bf16.msra.mxu0 0
      %329 = vmatprep.subr.bf16.mxu0 0
      %330 = vmatpush1.bf16.msra.mxu0 0
      %331 = vmatprep.subr.bf16.mxu0 0
      %332 = vmatpush1.bf16.msra.mxu0 0
      %333 = vmatprep.subr.bf16.mxu0 0
      %334 = vmatpush1.bf16.msra.mxu0 0
      %335 = vmatprep.subr.bf16.mxu0 0
      %336 = vmatpush1.bf16.msra.mxu0 0
      %337 = vmatprep.subr.bf16.mxu0 0
      %338 = vmatpush1.bf16.msra.mxu0 0
      %339 = vmatprep.subr.bf16.mxu0 0
      %340 = vmatpush1.bf16.msra.mxu0 0
      %341 = vmatprep.subr.bf16.mxu0 0
      %342 = vmatpush1.bf16.msra.mxu0 0
      %343 = vmatprep.subr.bf16.mxu0 0
      %344 = vmatpush1.bf16.msra.mxu0 0
      %345 = vmatprep.subr.bf16.mxu0 0
      %346 = vmatpush1.bf16.msra.mxu0 0
      %347 = vmatprep.subr.bf16.mxu0 0
      %348 = vmatpush1.bf16.msra.mxu0 0
      %349 = vmatprep.subr.bf16.mxu0 0
      %350 = vmatpush1.bf16.msra.mxu0 0
      %351 = vmatprep.subr.bf16.mxu0 0
      %352 = vmatpush1.bf16.msra.mxu0 0
      %353 = vmatprep.subr.bf16.mxu0 0
      %354 = vmatpush1.bf16.msra.mxu0 0
      %355 = vmatprep.mubr.bf16.mxu0 0
      %356 = vmatmul.mubr.bf16.gmra.mrb[0].mxu0 %v312
      %v357 = vpop.f32.mrb[0].mxu0
      %v358 = vadd.f32 %v302, %v357
      %v359 = vpop.f32.mrb[0].mxu0
      %v360 = vpop.f32.mrb[0].mxu0
      %v361 = vadd.f32 %v302, %v360
      %v362 = vpop.f32.mrb[0].mxu0
      %363 = vmatprep.mubr.bf16.mxu0 0
      %364 = vmatmul.mubr.bf16.gmra.mrb[0].mxu0 %v315
      %v365 = vpop.f32.mrb[0].mxu0
      %v366 = vadd.f32 %v302, %v365
      %v367 = vpop.f32.mrb[0].mxu0
      %v368 = vpop.f32.mrb[0].mxu0
      %v369 = vadd.f32 %v302, %v368
      %v370 = vpop.f32.mrb[0].mxu0
      %371 = vmatprep.mubr.bf16.mxu0 0
      %372 = vmatmul.mubr.bf16.gmra.mrb[0].mxu0 %v318
      %v373 = vpop.f32.mrb[0].mxu0
      %v374 = vadd.f32 %v302, %v373
      %v375 = vpop.f32.mrb[0].mxu0
      %v376 = vpop.f32.mrb[0].mxu0
      %v377 = vadd.f32 %v302, %v376
      %v378 = vpop.f32.mrb[0].mxu0
      %379 = vmatprep.mubr.bf16.mxu0 0
      %380 = vmatmul.mubr.bf16.gmra.mrb[0].mxu0 %v321
      %v381 = vpop.f32.mrb[0].mxu0
      %v382 = vadd.f32 %v302, %v381
      %v383 = vpop.f32.mrb[0].mxu0
      %v384 = vpop.f32.mrb[0].mxu0
      %v385 = vadd.f32 %v302, %v384
      %v386 = vpop.f32.mrb[0].mxu0
      %387 = vdwg.mxu0
      %v388 = vmax.f32 %v358, 0.0
      %v389 = vmax.f32 %v361, 0.0
      %v390 = vmax.f32 %v366, 0.0
      %v391 = vmax.f32 %v369, 0.0
      %v392 = vmax.f32 %v374, 0.0
      %v393 = vmax.f32 %v377, 0.0
      %v394 = vmax.f32 %v382, 0.0
      %v395 = vmax.f32 %v385, 0.0
      %v396 = vpack.c.bf16 %v389, %v388
      %v397 = vpack.c.bf16 %v391, %v390
      %v398 = vpack.c.bf16 %v393, %v392
      %v399 = vpack.c.bf16 %v395, %v394
      %v400 = vld [vmem:[%s3] sm:$0xf]
      %v401 = vld [vmem:[%s3 + $0x4] sm:$0xf]
      %v402 = vld [vmem:[%s3 + $0x8] sm:$0xf]
      %v403 = vld [vmem:[%s3 + $0xc] sm:$0xf]
      %v404 = vld [vmem:[%s3 + $0x10] sm:$0xf]
      %v405 = vld [vmem:[%s3 + $0x14] sm:$0xf]
      %v406 = vld [vmem:[%s3 + $0x18] sm:$0xf]
      %v407 = vld [vmem:[%s3 + $0x1c] sm:$0xf]
      %v408 = vld [vmem:[%s3 + $0x20] sm:$0xf]
      %v409 = vld [vmem:[%s3 + $0x24] sm:$0xf]
      %v410 = vld [vmem:[%s3 + $0x28] sm:$0xf]
      %v411 = vld [vmem:[%s3 + $0x2c] sm:$0xf]
      %v412 = vld [vmem:[%s3 + $0x30] sm:$0xf]
      %v413 = vld [vmem:[%s3 + $0x34] sm:$0xf]
      %v414 = vld [vmem:[%s3 + $0x38] sm:$0xf]
      %v415 = vld [vmem:[%s3 + $0x3c] sm:$0xf]
      %v416 = vld [vmem:[%s4] sm:$0x1]
      %v418 = vlaneseq
      %v419 = vshrl.u32 %v418, 7
      %v420 = vsub.s32 0, %v419
      %v421 = vrot.slane %v416, %v420
      %v439 = vunpack.c.l.b16 %v400
      %v440 = vunpack.c.l.b16 %v401
      %v441 = vunpack.c.l.b16 %v402
      %v442 = vunpack.c.l.b16 %v403
      %v443 = vunpack.c.l.b16 %v404
      %v444 = vunpack.c.l.b16 %v405
      %v445 = vunpack.c.l.b16 %v406
      %v446 = vunpack.c.l.b16 %v407
      %v447 = vunpack.c.l.b16 %v408
      %v448 = vunpack.c.l.b16 %v409
      %v449 = vunpack.c.l.b16 %v410
      %v450 = vunpack.c.l.b16 %v411
      %v451 = vunpack.c.l.b16 %v412
      %v452 = vunpack.c.l.b16 %v413
      %v453 = vunpack.c.l.b16 %v414
      %v454 = vunpack.c.l.b16 %v415
      %v455 = vpack.c.b16 %v440, %v439
      %v456 = vpack.c.b16 %v442, %v441
      %v457 = vpack.c.b16 %v444, %v443
      %v458 = vpack.c.b16 %v446, %v445
      %v459 = vpack.c.b16 %v448, %v447
      %v460 = vpack.c.b16 %v450, %v449
      %v461 = vpack.c.b16 %v452, %v451
      %v462 = vpack.c.b16 %v454, %v453
      %471 = vmatprep.subr.bf16.mxu0 0
      %472 = vmatpush1.bf16.msra.mxu0 %v455
      %473 = vmatprep.subr.bf16.mxu0 0
      %474 = vmatpush1.bf16.msra.mxu0 %v456
      %475 = vmatprep.subr.bf16.mxu0 0
      %476 = vmatpush1.bf16.msra.mxu0 %v457
      %477 = vmatprep.subr.bf16.mxu0 0
      %478 = vmatpush1.bf16.msra.mxu0 %v458
      %479 = vmatprep.subr.bf16.mxu0 0
      %480 = vmatpush1.bf16.msra.mxu0 %v459
      %481 = vmatprep.subr.bf16.mxu0 0
      %482 = vmatpush1.bf16.msra.mxu0 %v460
      %483 = vmatprep.subr.bf16.mxu0 0
      %484 = vmatpush1.bf16.msra.mxu0 %v461
      %485 = vmatprep.subr.bf16.mxu0 0
      %486 = vmatpush1.bf16.msra.mxu0 %v462
      %487 = vmatprep.subr.bf16.mxu0 0
      %488 = vmatpush1.bf16.msra.mxu0 0
      %489 = vmatprep.subr.bf16.mxu0 0
      %490 = vmatpush1.bf16.msra.mxu0 0
      %491 = vmatprep.subr.bf16.mxu0 0
      %492 = vmatpush1.bf16.msra.mxu0 0
      %493 = vmatprep.subr.bf16.mxu0 0
      %494 = vmatpush1.bf16.msra.mxu0 0
      %495 = vmatprep.subr.bf16.mxu0 0
      %496 = vmatpush1.bf16.msra.mxu0 0
      %497 = vmatprep.subr.bf16.mxu0 0
      %498 = vmatpush1.bf16.msra.mxu0 0
      %499 = vmatprep.subr.bf16.mxu0 0
      %500 = vmatpush1.bf16.msra.mxu0 0
      %501 = vmatprep.subr.bf16.mxu0 0
      %502 = vmatpush1.bf16.msra.mxu0 0
      %503 = vmatprep.mubr.bf16.mxu0 0
      %504 = vmatmul.mubr.bf16.gmra.mrb[0].mxu0 %v396
      %v505 = vpop.f32.mrb[0].mxu0
      %v506 = vadd.f32 %v421, %v505
      %v507 = vpop.f32.mrb[0].mxu0
      %v508 = vpop.f32.mrb[0].mxu0
      %v509 = vadd.f32 %v421, %v508
      %v510 = vpop.f32.mrb[0].mxu0
      %511 = vmatprep.mubr.bf16.mxu0 0
      %512 = vmatmul.mubr.bf16.gmra.mrb[0].mxu0 %v397
      %v513 = vpop.f32.mrb[0].mxu0
      %v514 = vadd.f32 %v421, %v513
      %v515 = vpop.f32.mrb[0].mxu0
      %v516 = vpop.f32.mrb[0].mxu0
      %v517 = vadd.f32 %v421, %v516
      %v518 = vpop.f32.mrb[0].mxu0
      %519 = vmatprep.mubr.bf16.mxu0 0
      %520 = vmatmul.mubr.bf16.gmra.mrb[0].mxu0 %v398
      %v521 = vpop.f32.mrb[0].mxu0
      %v522 = vadd.f32 %v421, %v521
      %v523 = vpop.f32.mrb[0].mxu0
      %v524 = vpop.f32.mrb[0].mxu0
      %v525 = vadd.f32 %v421, %v524
      %v526 = vpop.f32.mrb[0].mxu0
      %527 = vmatprep.mubr.bf16.mxu0 0
      %528 = vmatmul.mubr.bf16.gmra.mrb[0].mxu0 %v399
      %v529 = vpop.f32.mrb[0].mxu0
      %v530 = vadd.f32 %v421, %v529
      %v531 = vpop.f32.mrb[0].mxu0
      %v532 = vpop.f32.mrb[0].mxu0
      %v533 = vadd.f32 %v421, %v532
      %v534 = vpop.f32.mrb[0].mxu0
      %535 = vdwg.mxu0
      %v536 = vmax.f32 %v506, 0.0
      %v537 = vmax.f32 %v509, 0.0
      %v538 = vmax.f32 %v514, 0.0
      %v539 = vmax.f32 %v517, 0.0
      %v540 = vmax.f32 %v522, 0.0
      %v541 = vmax.f32 %v525, 0.0
      %v542 = vmax.f32 %v530, 0.0
      %v543 = vmax.f32 %v533, 0.0
      %v544 = vpack.c.bf16 %v537, %v536
      %v545 = vpack.c.bf16 %v539, %v538
      %v546 = vpack.c.bf16 %v541, %v540
      %v547 = vpack.c.bf16 %v543, %v542
      %v548 = vld [vmem:[%s5] sm:$0xf]
      %v549 = vld [vmem:[%s5 + $0x4] sm:$0xf]
      %v550 = vld [vmem:[%s5 + $0x8] sm:$0xf]
      %v551 = vld [vmem:[%s5 + $0xc] sm:$0xf]
      %v552 = vld [vmem:[%s5 + $0x10] sm:$0xf]
      %v553 = vld [vmem:[%s5 + $0x14] sm:$0xf]
      %v554 = vld [vmem:[%s5 + $0x18] sm:$0xf]
      %v555 = vld [vmem:[%s5 + $0x1c] sm:$0xf]
      %v556 = vld [vmem:[%s5 + $0x20] sm:$0xf]
      %v557 = vld [vmem:[%s5 + $0x24] sm:$0xf]
      %v558 = vld [vmem:[%s5 + $0x28] sm:$0xf]
      %v559 = vld [vmem:[%s5 + $0x2c] sm:$0xf]
      %v560 = vld [vmem:[%s5 + $0x30] sm:$0xf]
      %v561 = vld [vmem:[%s5 + $0x34] sm:$0xf]
      %v562 = vld [vmem:[%s5 + $0x38] sm:$0xf]
      %v563 = vld [vmem:[%s5 + $0x3c] sm:$0xf]
      %v564 = vld [vmem:[%s6] sm:$0x1]
      %v566 = vlaneseq
      %v567 = vshrl.u32 %v566, 7
      %v568 = vsub.s32 0, %v567
      %v569 = vrot.slane %v564, %v568
      %v587 = vunpack.c.l.b16 %v548
      %v588 = vunpack.c.l.b16 %v549
      %v589 = vunpack.c.l.b16 %v550
      %v590 = vunpack.c.l.b16 %v551
      %v591 = vunpack.c.l.b16 %v552
      %v592 = vunpack.c.l.b16 %v553
      %v593 = vunpack.c.l.b16 %v554
      %v594 = vunpack.c.l.b16 %v555
      %v595 = vunpack.c.l.b16 %v556
      %v596 = vunpack.c.l.b16 %v557
      %v597 = vunpack.c.l.b16 %v558
      %v598 = vunpack.c.l.b16 %v559
      %v599 = vunpack.c.l.b16 %v560
      %v600 = vunpack.c.l.b16 %v561
      %v601 = vunpack.c.l.b16 %v562
      %v602 = vunpack.c.l.b16 %v563
      %v603 = vpack.c.b16 %v588, %v587
      %v604 = vpack.c.b16 %v590, %v589
      %v605 = vpack.c.b16 %v592, %v591
      %v606 = vpack.c.b16 %v594, %v593
      %v607 = vpack.c.b16 %v596, %v595
      %v608 = vpack.c.b16 %v598, %v597
      %v609 = vpack.c.b16 %v600, %v599
      %v610 = vpack.c.b16 %v602, %v601
      %619 = vmatprep.subr.bf16.mxu0 0
      %620 = vmatpush1.bf16.msra.mxu0 %v603
      %621 = vmatprep.subr.bf16.mxu0 0
      %622 = vmatpush1.bf16.msra.mxu0 %v604
      %623 = vmatprep.subr.bf16.mxu0 0
      %624 = vmatpush1.bf16.msra.mxu0 %v605
      %625 = vmatprep.subr.bf16.mxu0 0
      %626 = vmatpush1.bf16.msra.mxu0 %v606
      %627 = vmatprep.subr.bf16.mxu0 0
      %628 = vmatpush1.bf16.msra.mxu0 %v607
      %629 = vmatprep.subr.bf16.mxu0 0
      %630 = vmatpush1.bf16.msra.mxu0 %v608
      %631 = vmatprep.subr.bf16.mxu0 0
      %632 = vmatpush1.bf16.msra.mxu0 %v609
      %633 = vmatprep.subr.bf16.mxu0 0
      %634 = vmatpush1.bf16.msra.mxu0 %v610
      %635 = vmatprep.subr.bf16.mxu0 0
      %636 = vmatpush1.bf16.msra.mxu0 0
      %637 = vmatprep.subr.bf16.mxu0 0
      %638 = vmatpush1.bf16.msra.mxu0 0
      %639 = vmatprep.subr.bf16.mxu0 0
      %640 = vmatpush1.bf16.msra.mxu0 0
      %641 = vmatprep.subr.bf16.mxu0 0
      %642 = vmatpush1.bf16.msra.mxu0 0
      %643 = vmatprep.subr.bf16.mxu0 0
      %644 = vmatpush1.bf16.msra.mxu0 0
      %645 = vmatprep.subr.bf16.mxu0 0
      %646 = vmatpush1.bf16.msra.mxu0 0
      %647 = vmatprep.subr.bf16.mxu0 0
      %648 = vmatpush1.bf16.msra.mxu0 0
      %649 = vmatprep.subr.bf16.mxu0 0
      %650 = vmatpush1.bf16.msra.mxu0 0
      %651 = vmatprep.mubr.bf16.mxu0 0
      %652 = vmatmul.mubr.bf16.gmra.mrb[0].mxu0 %v544
      %v653 = vpop.f32.mrb[0].mxu0
      %v654 = vadd.f32 %v569, %v653
      %v655 = vpop.f32.mrb[0].mxu0
      %v656 = vpop.f32.mrb[0].mxu0
      %v657 = vadd.f32 %v569, %v656
      %v658 = vpop.f32.mrb[0].mxu0
      %659 = vmatprep.mubr.bf16.mxu0 0
      %660 = vmatmul.mubr.bf16.gmra.mrb[0].mxu0 %v545
      %v661 = vpop.f32.mrb[0].mxu0
      %v662 = vadd.f32 %v569, %v661
      %v663 = vpop.f32.mrb[0].mxu0
      %v664 = vpop.f32.mrb[0].mxu0
      %v665 = vadd.f32 %v569, %v664
      %v666 = vpop.f32.mrb[0].mxu0
      %667 = vmatprep.mubr.bf16.mxu0 0
      %668 = vmatmul.mubr.bf16.gmra.mrb[0].mxu0 %v546
      %v669 = vpop.f32.mrb[0].mxu0
      %v670 = vadd.f32 %v569, %v669
      %v671 = vpop.f32.mrb[0].mxu0
      %v672 = vpop.f32.mrb[0].mxu0
      %v673 = vadd.f32 %v569, %v672
      %v674 = vpop.f32.mrb[0].mxu0
      %675 = vmatprep.mubr.bf16.mxu0 0
      %676 = vmatmul.mubr.bf16.gmra.mrb[0].mxu0 %v547
      %v677 = vpop.f32.mrb[0].mxu0
      %v678 = vadd.f32 %v569, %v677
      %v679 = vpop.f32.mrb[0].mxu0
      %v680 = vpop.f32.mrb[0].mxu0
      %v681 = vadd.f32 %v569, %v680
      %v682 = vpop.f32.mrb[0].mxu0
      %683 = vdwg.mxu0
      %vm684 = vcmask 64512
      %685 = vst.msk [vmem:[%s280] sm:$0xff] %vm684, %v654
      %686 = vst.msk [vmem:[%s280 + $0x8] sm:$0xff] %vm684, %v657
      %687 = vst.msk [vmem:[%s280 + $0x10] sm:$0xff] %vm684, %v662
      %688 = vst.msk [vmem:[%s280 + $0x18] sm:$0xff] %vm684, %v665
      %689 = vst.msk [vmem:[%s280 + $0x20] sm:$0xff] %vm684, %v670
      %690 = vst.msk [vmem:[%s280 + $0x28] sm:$0xff] %vm684, %v673
      %691 = vst.msk [vmem:[%s280 + $0x30] sm:$0xff] %vm684, %v678
      %692 = vst.msk [vmem:[%s280 + $0x38] sm:$0xff] %vm684, %v681
      %s693 = smul.u32 8, %s18
      %p694 = scmp.lt.s32.totalorder %s693, 31
      %s695 = scalar_select %p694, %s693, 31
      %s696 = smul.addr %s695, 8
      %s697 = scalar_lea.vmem %s7, %s696
      // Predicated region
      $region49: #{particle_net_forward.1} parent=47 // pred_check
        %p698 = pneg %p188
      $region50: #{particle_net_forward.1} parent=47 // pred_check_branch
        %700 = sbr.rel (%p698) target = $region52
      $region51: #{particle_net_forward.1} parent=47 // pred_region
        %s701 = smul.u32 8, %s18
      $region52: #{particle_net_forward.1} parent=47 // pred_fallthru
        _
    $region48: #{particle_net_forward.1} parent=5 // pred_fallthru
      _
    %p702 = scmp.le.s32.totalorder 2, %s13
    // Predicated region
    $region53: #{particle_net_forward.1} parent=5 // pred_check
      %p703 = pneg %p702
    $region54: #{particle_net_forward.1} parent=5 // pred_check_branch
      %705 = sbr.rel (%p703) target = $region56
    $region55: #{particle_net_forward.1} parent=5 // pred_region
      %s706 = ssub.s32 %s13, 2
      // Predicated region
      $region57: #{particle_net_forward.1} parent=55 // pred_check
        %p707 = pneg %p194
      $region58: #{particle_net_forward.1} parent=55 // pred_check_branch
        %709 = sbr.rel (%p707) target = $region60
      $region59: #{particle_net_forward.1} parent=55 // pred_region
        %s710 = smul.u32 8, %s19
        %p711 = scmp.lt.s32.totalorder %s710, 31
        %s712 = scalar_select %p711, %s710, 31
        %s713 = smul.addr %s712, 8
        %s714 = scalar_lea.vmem %s7, %s713
      $region60: #{particle_net_forward.1} parent=55 // pred_fallthru
        _
    $region56: #{particle_net_forward.1} parent=5 // pred_fallthru
      _
  $region6: #{particle_net_forward.1} parent=0 // loop_footer
    %s17 = sadd.s32 1, %s13
  $region7: #{particle_net_forward.1} parent=0 // loop_footer_branch
    %12 = sbr.rel target = $region3
  $region8: #{particle_net_forward.1} parent=0 // loop_exit
    _

</llo_original>
